<compile_context>
chip_gen: v7x
topology: tpu7x:2x2x1
jax: 0.10.0
libtpu: 0.0.40
codegen_flags: <defaults>
</compile_context>

<pallas_src>
import jax
import jax.numpy as jnp
from jax.experimental import pallas as pl
from jax.experimental.pallas import tpu as pltpu


def _attention_kernel(q_ref, k_ref, v_ref, o_ref):
    # Block shapes:
    #   q_ref: (TB, L), k_ref: (TB, S, L), v_ref: (TB, S, L), o_ref: (TB, L)
    q = q_ref[...].astype(jnp.float32)            # (TB, L)
    k = k_ref[...].astype(jnp.float32)            # (TB, S, L)

    # scores[b, s] = sum_l q[b, l] * k[b, s, l]   (VPU mul + lane reduce; no
    # explicit transpose / M=1 MXU matmul).
    scores = jnp.sum(q[:, None, :] * k, axis=-1)  # (TB, S) f32

    # Numerically stable softmax over S.
    m = jnp.max(scores, axis=-1, keepdims=True)
    e = jnp.exp(scores - m)
    denom = jnp.sum(e, axis=-1, keepdims=True)
    alpha = e * pl.reciprocal(denom, approx=True)  # EUP vrcp (otherwise idle)

    # result[b, l] = sum_s alpha[b, s] * v[b, s, l]   (f32 accumulation)
    v = v_ref[...].astype(jnp.float32)            # (TB, S, L)
    out = jnp.sum(alpha[:, :, None] * v, axis=1)  # (TB, L) f32
    o_ref[...] = out.astype(o_ref.dtype)


def _round_up(x, m):
    return ((x + m - 1) // m) * m


def _choose_tb(B, S, L, itemsize):
    """Pick the batch tile so K+V double-buffered tiles fit a ~16 MiB budget."""
    budget = 16 * 1024 * 1024                 # bytes for 2 tensors x 2 buffers
    per_row = 4 * S * L * itemsize            # (K + V) x double buffering
    tb = max(1, budget // per_row)
    tb = min(tb, 1024)
    if B >= 16:
        # Keep >= 2 grid steps so both v7x TensorCores get work.
        tb = min(tb, _round_up((B + 1) // 2, 8))
    if tb >= B:
        return B                              # single block = full batch dim
    # When tiling, the second-to-last block dim must be a multiple of 8.
    return max(8, (tb // 8) * 8)


def attention(query, keys, values):
    """query: [B, L]; keys: [B, S, L]; values: [B, S, L] -> [B, L]."""
    B, L = query.shape
    _, S, Lk = keys.shape
    assert Lk == L and values.shape == (B, S, L)

    tb = _choose_tb(B, S, L, jnp.dtype(keys.dtype).itemsize)
    num_blocks = pl.cdiv(B, tb)
    B_pad = num_blocks * tb

    if B_pad != B:
        pad = B_pad - B
        query = jnp.pad(query, ((0, pad), (0, 0)))
        keys = jnp.pad(keys, ((0, pad), (0, 0), (0, 0)))
        values = jnp.pad(values, ((0, pad), (0, 0), (0, 0)))

    out = pl.pallas_call(
        _attention_kernel,
        out_shape=jax.ShapeDtypeStruct((B_pad, L), query.dtype),
        grid_spec=pltpu.PrefetchScalarGridSpec(
            num_scalar_prefetch=0,
            grid=(num_blocks,),
            in_specs=[
                pl.BlockSpec((tb, L), lambda b: (b, 0)),
                pl.BlockSpec((tb, S, L), lambda b: (b, 0, 0)),
                pl.BlockSpec((tb, S, L), lambda b: (b, 0, 0)),
            ],
            out_specs=pl.BlockSpec((tb, L), lambda b: (b, 0)),
        ),
        compiler_params=pltpu.CompilerParams(
            dimension_semantics=("parallel",),
            vmem_limit_bytes=48 * 1024 * 1024,
        ),
    )(query, keys, values)

    return out[:B] if B_pad != B else out


def _reference(query, keys, values):
    q3 = query[:, None, :]                          # [B, 1, L]
    scores = jnp.einsum("bql,bsl->bqs", q3, keys)   # [B, 1, S]
    alpha = jax.nn.softmax(scores, axis=-1)
    return jnp.einsum("bqs,bsl->bql", alpha, values)[:, 0, :]


if __name__ == "__main__":
    B, S, L = 2, 8, 32
    key = jax.random.PRNGKey(0)
    kq, kk, kv = jax.random.split(key, 3)
    query = jax.random.normal(kq, (B, L), dtype=jnp.float32)
    keys = jax.random.normal(kk, (B, S, L), dtype=jnp.float32)
    values = jax.random.normal(kv, (B, S, L), dtype=jnp.float32)

    out = attention(query, keys, values)
    jax.block_until_ready(out)

    ref = _reference(query, keys, values)
    assert out.shape == (B, L)
    # approx=True reciprocal trades a few bits of mantissa for the EUP slot.
    assert jnp.allclose(out, ref, atol=5e-3, rtol=5e-3)

    print("KERNEL_OK")
</pallas_src>

<mosaic_0001>
module attributes {stable_mosaic.version = 11 : i64} {
  func.func @_attention_kernel(%arg0: i32, %arg1: memref<2x32xf32, #tpu.memory_space<vmem>>, %arg2: memref<2x8x32xf32, #tpu.memory_space<vmem>>, %arg3: memref<2x8x32xf32, #tpu.memory_space<vmem>>, %arg4: memref<2x32xf32, #tpu.memory_space<vmem>>) attributes {dimension_semantics = [#tpu.dimension_semantics<parallel>], iteration_bounds = array<i64: 1>, scalar_prefetch = 0 : i64, scratch_operands = 0 : i64, tpu.core_type = #tpu.core_type<tc>, window_params = [{transform_indices = @transform_0, window_bounds = array<i64: 2, 32>}, {transform_indices = @transform_1, window_bounds = array<i64: 2, 8, 32>}, {transform_indices = @transform_2, window_bounds = array<i64: 2, 8, 32>}, {transform_indices = @transform_3, window_bounds = array<i64: 2, 32>}]} {
    %c0 = arith.constant 0 : index
    %c0_0 = arith.constant 0 : index
    %0 = vector.load %arg1[%c0, %c0_0] : memref<2x32xf32, #tpu.memory_space<vmem>>, vector<2x32xf32>
    %c0_1 = arith.constant 0 : index
    %c0_2 = arith.constant 0 : index
    %c0_3 = arith.constant 0 : index
    %1 = vector.load %arg2[%c0_1, %c0_2, %c0_3] : memref<2x8x32xf32, #tpu.memory_space<vmem>>, vector<2x8x32xf32>
    %2 = vector.shape_cast %0 : vector<2x32xf32> to vector<2x1x32xf32>
    %3 = vector.broadcast %2 : vector<2x1x32xf32> to vector<2x8x32xf32>
    %4 = arith.mulf %3, %1 : vector<2x8x32xf32>
    %cst = arith.constant dense<0.000000e+00> : vector<2x8xf32>
    %5 = vector.multi_reduction <add>, %4, %cst [2] : vector<2x8x32xf32> to vector<2x8xf32>
    %cst_4 = arith.constant dense<0xFF800000> : vector<2xf32>
    %6 = vector.multi_reduction <maximumf>, %5, %cst_4 [1] : vector<2x8xf32> to vector<2xf32>
    %7 = vector.shape_cast %6 : vector<2xf32> to vector<2x1xf32>
    %8 = vector.broadcast %7 : vector<2x1xf32> to vector<2x8xf32>
    %9 = arith.subf %5, %8 : vector<2x8xf32>
    %10 = math.exp %9 : vector<2x8xf32>
    %cst_5 = arith.constant dense<0.000000e+00> : vector<2xf32>
    %11 = vector.multi_reduction <add>, %10, %cst_5 [1] : vector<2x8xf32> to vector<2xf32>
    %12 = vector.shape_cast %11 : vector<2xf32> to vector<2x1xf32>
    %13 = tpu.reciprocal %12 {approx = true} : vector<2x1xf32> -> vector<2x1xf32>
    %14 = vector.broadcast %13 : vector<2x1xf32> to vector<2x8xf32>
    %15 = arith.mulf %10, %14 : vector<2x8xf32>
    %c0_6 = arith.constant 0 : index
    %c0_7 = arith.constant 0 : index
    %c0_8 = arith.constant 0 : index
    %16 = vector.load %arg3[%c0_6, %c0_7, %c0_8] : memref<2x8x32xf32, #tpu.memory_space<vmem>>, vector<2x8x32xf32>
    %17 = vector.shape_cast %15 : vector<2x8xf32> to vector<2x8x1xf32>
    %18 = vector.broadcast %17 : vector<2x8x1xf32> to vector<2x8x32xf32>
    %19 = arith.mulf %18, %16 : vector<2x8x32xf32>
    %cst_9 = arith.constant dense<0.000000e+00> : vector<2x32xf32>
    %20 = vector.multi_reduction <add>, %19, %cst_9 [1] : vector<2x8x32xf32> to vector<2x32xf32>
    %c0_10 = arith.constant 0 : index
    %c0_11 = arith.constant 0 : index
    %21 = vector.load %arg4[%c0_10, %c0_11] : memref<2x32xf32, #tpu.memory_space<vmem>>, vector<2x32xf32>
    tpu.vector_store %arg4[%c0_10, %c0_11], %20 {strides = array<i32>} : memref<2x32xf32, #tpu.memory_space<vmem>>, vector<2x32xf32>,
    return
  }
  func.func @transform_0(%arg0: i32) -> (i32, i32) {
    %c0_i32 = arith.constant 0 : i32
    %c0_i32_0 = arith.constant 0 : i32
    return %arg0, %c0_i32 : i32, i32
  }
  func.func @transform_1(%arg0: i32) -> (i32, i32, i32) {
    %c0_i32 = arith.constant 0 : i32
    %c0_i32_0 = arith.constant 0 : i32
    %c0_i32_1 = arith.constant 0 : i32
    return %arg0, %c0_i32, %c0_i32_0 : i32, i32, i32
  }
  func.func @transform_2(%arg0: i32) -> (i32, i32, i32) {
    %c0_i32 = arith.constant 0 : i32
    %c0_i32_0 = arith.constant 0 : i32
    %c0_i32_1 = arith.constant 0 : i32
    return %arg0, %c0_i32, %c0_i32_0 : i32, i32, i32
  }
  func.func @transform_3(%arg0: i32) -> (i32, i32) {
    %c0_i32 = arith.constant 0 : i32
    %c0_i32_0 = arith.constant 0 : i32
    return %arg0, %c0_i32 : i32, i32
  }
}

</mosaic_0001>

<llo_original>
// kernel: tpu_custom_call.1
$region0: #{tpu_custom_call.1}
  #allocation0 [shape = 'u32[]', space=smem, size = 0x4, offset = 0x4, fixed_abs, tag = 'smem constant byte address 0x4 - core index']
  #allocation1 [shape = 'u32[144,128]{1,0:T(1,128)}', space=vmem, size = 0x12000, scoped, tag = 'internal scratch']
  %s0 = inlined_call_operand.hbm [shape: f32[2,32], index: 0, kind: input, shape index: {}]
  %s1 = inlined_call_operand.hbm [shape: f32[2,8,32], index: 1, kind: input, shape index: {}]
  %s2 = inlined_call_operand.hbm [shape: f32[2,8,32], index: 2, kind: input, shape index: {}]
  %s3 = inlined_call_operand.hbm [shape: f32[2,32], index: 3, kind: output, shape index: {}]
  %s4 = sld [smem:[#allocation0]]
  $region34: #{tpu_custom_call.1} parent=0
    _
  %s6 = ssub.s32 1, %s4
  %s7 = scalar_select 0, %s6, %s4
  $region1: #{tpu_custom_call.1} parent=0
    #allocation2 [shape = 'u8[1024]{0}', space=vmem, size = 0x400, scoped, tag = 'input window, operand 0, single buffered']
    #allocation3 [shape = 's32[1]{0}', space=sflag, size = 0x4, scoped, tag = 'scoped memory for tpu_custom_call.1']
    #allocation4 [shape = 's32[1]{0}', space=sflag, size = 0x4, scoped, tag = 'scoped memory for tpu_custom_call.1']
    #allocation5 [shape = 'u8[8192]{0}', space=vmem, size = 0x2000, scoped, tag = 'input window, operand 1, single buffered']
    #allocation6 [shape = 's32[1]{0}', space=sflag, size = 0x4, scoped, tag = 'scoped memory for tpu_custom_call.1']
    #allocation7 [shape = 'u8[8192]{0}', space=vmem, size = 0x2000, scoped, tag = 'input window, operand 2, single buffered']
    #allocation8 [shape = 'u8[1024]{0}', space=vmem, size = 0x400, scoped, tag = 'output window, operand 0, single buffered']
    %8 = vsyncpa [#allocation3], 0
    %9 = vsyncpa [#allocation6], 0
    %10 = vsyncpa [#allocation4], 0
    // Predicated region
    $region2: #{tpu_custom_call.1} parent=1 // pred_check
      _
    $region3: #{tpu_custom_call.1} parent=1 // pred_check_branch
      %12 = sbr.rel (0) target = $region5
    $region4: #{tpu_custom_call.1} parent=1 // pred_region
      %s14 = ssub.s32 32, 32
      %15 = vsyncadd [#allocation3], %s14
      %s17 = sshll.u32 [#allocation2], 4
      %s18 = int_to_ptr.vmem [resolvable:$true] %s17
      %20 = dma.hbm_to_vmem [thread:$0]  %s0, 32, %s18, [#allocation3]
    $region5: #{tpu_custom_call.1} parent=1 // pred_fallthru
      _
    // Predicated region
    $region6: #{tpu_custom_call.1} parent=1 // pred_check
      _
    $region7: #{tpu_custom_call.1} parent=1 // pred_check_branch
      %22 = sbr.rel (0) target = $region9
    $region8: #{tpu_custom_call.1} parent=1 // pred_region
      %s24 = ssub.s32 256, 256
      %25 = vsyncadd [#allocation6], %s24
      %s26 = sshll.u32 [#allocation5], 4
      %s27 = int_to_ptr.vmem [resolvable:$true] %s26
      %32 = dma.hbm_to_vmem [thread:$0]  %s1, 256, %s27, [#allocation6], 128, 128, 8
    $region9: #{tpu_custom_call.1} parent=1 // pred_fallthru
      _
    // Predicated region
    $region10: #{tpu_custom_call.1} parent=1 // pred_check
      _
    $region11: #{tpu_custom_call.1} parent=1 // pred_check_branch
      %34 = sbr.rel (0) target = $region13
    $region12: #{tpu_custom_call.1} parent=1 // pred_region
      %s36 = ssub.s32 256, 256
      %37 = vsyncadd [#allocation6], %s36
      %s38 = sshll.u32 [#allocation7], 4
      %s39 = int_to_ptr.vmem [resolvable:$true] %s38
      %44 = dma.hbm_to_vmem [thread:$0]  %s2, 256, %s39, [#allocation6], 128, 128, 8
    $region13: #{tpu_custom_call.1} parent=1 // pred_fallthru
      _
    // Predicated region
    $region14: #{tpu_custom_call.1} parent=1 // pred_check
      _
    $region15: #{tpu_custom_call.1} parent=1 // pred_check_branch
      %46 = sbr.rel (0) target = $region17
    $region16: #{tpu_custom_call.1} parent=1 // pred_region
      %47 = dma.done [#allocation3], 32
    $region17: #{tpu_custom_call.1} parent=1 // pred_fallthru
      _
    // Predicated region
    $region18: #{tpu_custom_call.1} parent=1 // pred_check
      _
    $region19: #{tpu_custom_call.1} parent=1 // pred_check_branch
      %49 = sbr.rel (0) target = $region21
    $region20: #{tpu_custom_call.1} parent=1 // pred_region
      %50 = dma.done [#allocation6], 256
    $region21: #{tpu_custom_call.1} parent=1 // pred_fallthru
      _
    // Predicated region
    $region22: #{tpu_custom_call.1} parent=1 // pred_check
      _
    $region23: #{tpu_custom_call.1} parent=1 // pred_check_branch
      %52 = sbr.rel (0) target = $region25
    $region24: #{tpu_custom_call.1} parent=1 // pred_region
      %53 = dma.done [#allocation6], 256
    $region25: #{tpu_custom_call.1} parent=1 // pred_fallthru
      _
    %v54 = vld [vmem:[#allocation2] sm:$0x3]
    %v55 = vld [vmem:[#allocation5] sm:$0xff]
    %v56 = vld [vmem:[#allocation5 + $0x8] sm:$0xff]
    %v59 = vunpack.c.l.s4 1966171168
    %v60 = vunpack.c.0.s8 %v59
    %v61 = vlaneseq
    %v62 = vshrl.u32 %v61, 7
    %v63 = vsub.s32 %v60, %v62
    %v64 = vrot.slane %v54, %v63
    %v65 = vcombine.high %v64, %v64
    %v67 = vunpack.c.l.s4 1966171168
    %v68 = vunpack.c.0.s8 %v67
    %v69 = vlaneseq
    %v70 = vshrl.u32 %v69, 7
    %v71 = vsub.s32 %v68, %v70
    %v72 = vrot.slane %v64, %v71
    %v74 = vunpack.c.l.s4 1966171168
    %v75 = vunpack.c.0.s8 %v74
    %v76 = vlaneseq
    %v77 = vshrl.u32 %v76, 7
    %v78 = vsub.s32 %v75, %v77
    %v79 = vrot.slane %v65, %v78
    %v80 = vlaneseq
    %v81 = vshrl.u32 %v80, 7
    %v82 = vsub.s32 0, %v81
    %v83 = vrot.slane %v72, %v82
    %v84 = vlaneseq
    %v85 = vshrl.u32 %v84, 7
    %v86 = vsub.s32 0, %v85
    %v87 = vrot.slane %v79, %v86
    %v90 = vmul.f32 %v83, %v55
    %v91 = vmul.f32 %v87, %v56
    %vm92 = vcmask 261120
    %v93 = vsel %vm92, %v90, 0.0
    %94 = vadd.xlane.f32.xlu0 %v93
    %v95 = vpop.xlane.xlu0 %94
    %v96 = vsel %vm92, %v91, 0.0
    %97 = vadd.xlane.f32.xlu0 %v96
    %v98 = vpop.xlane.xlu0 %97
    %v101 = vlaneseq
    %v102 = vand.u32 %v101, 127
    %v103 = vlaneseq
    %v104 = vshrl.u32 %v103, 7
    %v105 = vsub.s32 %v102, %v104
    %v106 = vrot.slane %v95, %v105
    %v107 = vlaneseq
    %v108 = vshrl.u32 %v107, 7
    %v109 = vsub.s32 %v102, %v108
    %v110 = vrot.slane %v98, %v109
    %vm111 = vcmask 1041409
    %v112 = vsel %vm111, %v110, %v106
    %vm114 = vcmask 58368
    %v115 = vsel %vm114, %v112, -inf
    %116 = vmax.xlane.f32.xlu0 %v115
    %v117 = vpop.xlane.xlu0 %116
    %v119 = vlaneseq
    %v120 = vshrl.u32 %v119, 7
    %v121 = vsub.s32 0, %v120
    %v122 = vrot.slane %v117, %v121
    %v123 = vlaneseq
    %v124 = vshrl.u32 %v123, 7
    %v125 = vsub.s32 1, %v124
    %v126 = vrot.slane %v117, %v125
    %v129 = vsub.f32 %v95, %v122
    %v130 = vsub.f32 %v98, %v126
    %v131 = vmul.f32 %v129, 1.442695
    %v132 = vpow.pop %v131
    %v133 = vmul.f32 %v130, 1.442695
    %v134 = vpow.pop %v133
    %137 = vset.pattern.permute.xlu0 0
    %138 = vperm.xlu0 %137, %v132
    %v139 = vpop.permute.xlu0 %138
    %140 = vset.pattern.permute.xlu0 0
    %141 = vperm.xlu0 %140, %v134
    %v142 = vpop.permute.xlu0 %141
    %v143 = vlaneseq
    %v144 = vshrl.u32 %v143, 7
    %v145 = vsub.s32 %v102, %v144
    %v146 = vrot.slane %v139, %v145
    %v147 = vlaneseq
    %v148 = vshrl.u32 %v147, 7
    %v149 = vsub.s32 %v102, %v148
    %v150 = vrot.slane %v142, %v149
    %v151 = vsel %vm111, %v150, %v146
    %v153 = vsel %vm114, %v151, 0.0
    %154 = vadd.xlane.f32.xlu0 %v153
    %v155 = vpop.xlane.xlu0 %154
    %v156 = vrcp.pop %v155
    %v158 = vlaneseq
    %v159 = vshrl.u32 %v158, 7
    %v160 = vsub.s32 0, %v159
    %v161 = vrot.slane %v156, %v160
    %v162 = vlaneseq
    %v163 = vshrl.u32 %v162, 7
    %v164 = vsub.s32 1, %v163
    %v165 = vrot.slane %v156, %v164
    %v168 = vmul.f32 %v132, %v161
    %v169 = vmul.f32 %v134, %v165
    %v170 = vld [vmem:[#allocation7] sm:$0xff]
    %v171 = vld [vmem:[#allocation7 + $0x8] sm:$0xff]
    %173 = vset.pattern.permute.xlu0 0
    %174 = vperm.xlu0 %173, %v168
    %v175 = vpop.permute.xlu0 %174
    %178 = vset.pattern.permute.xlu0 0
    %179 = vperm.xlu0 %178, %v169
    %v180 = vpop.permute.xlu0 %179
    %v182 = vmul.f32 %v175, %v170
    %v183 = vmul.f32 %v180, %v171
    %v184 = vsel %vm92, %v182, 0.0
    %v185 = vrot.slane %v184, 4
    %v186 = vadd.f32 %v184, %v185
    %v187 = vrot.slane %v186, 2
    %v188 = vadd.f32 %v186, %v187
    %v189 = vrot.slane %v188, 1
    %v190 = vadd.f32 %v188, %v189
    %v191 = vsel %vm92, %v183, 0.0
    %v192 = vrot.slane %v191, 4
    %v193 = vadd.f32 %v191, %v192
    %v194 = vrot.slane %v193, 2
    %v195 = vadd.f32 %v193, %v194
    %v196 = vrot.slane %v195, 1
    %v197 = vadd.f32 %v195, %v196
    %v200 = vsel %vm111, %v197, %v190
    %vm202 = vcmask 254976
    %203 = vst.msk [vmem:[#allocation8] sm:$0x3] %vm202, %v200
    // Predicated region
    $region26: #{tpu_custom_call.1} parent=1 // pred_check
      _
    $region27: #{tpu_custom_call.1} parent=1 // pred_check_branch
      %205 = sbr.rel (0) target = $region29
    $region28: #{tpu_custom_call.1} parent=1 // pred_region
      %s207 = ssub.s32 32, 32
      %208 = vsyncadd [#allocation4], %s207
      %s210 = sshll.u32 [#allocation8], 4
      %s211 = int_to_ptr.vmem [resolvable:$true] %s210
      %213 = dma.vmem_to_hbm [thread:$0]  %s211, 32, %s3, [#allocation4]
    $region29: #{tpu_custom_call.1} parent=1 // pred_fallthru
      _
    // Predicated region
    $region30: #{tpu_custom_call.1} parent=1 // pred_check
      _
    $region31: #{tpu_custom_call.1} parent=1 // pred_check_branch
      %215 = sbr.rel (0) target = $region33
    $region32: #{tpu_custom_call.1} parent=1 // pred_region
      %216 = dma.done [#allocation4], 32
    $region33: #{tpu_custom_call.1} parent=1 // pred_fallthru
      _
    %217 = vsyncpa [#allocation3], 1
    %218 = vsyncpa [#allocation6], 1
    %219 = vsyncpa [#allocation4], 1

</llo_original>
